<compile_context>
chip_gen: v5e
topology: v5e:2x2
jax: 0.10.0
libtpu: 0.0.40
codegen_flags: <defaults>
</compile_context>

<pallas_src>
import functools
import math

import jax
import jax.numpy as jnp
from jax import lax
from jax.experimental import pallas as pl
from jax.experimental.pallas import tpu as pltpu


def _round_up(x: int, m: int) -> int:
    return (x + m - 1) // m * m


def _positive_linear_kernel(x_ref, w_ref, o_ref, *scratch, exp_weights,
                            acc_in_out, compute_dtype):
    # Grid order is (i, j, k): i = batch tile, j = out_features tile,
    # k = in_features (reduction) tile - reduction axis innermost.
    k = pl.program_id(2)

    # Output block index ignores k, so o_ref is VMEM-resident across the
    # reduction; when it is f32 we accumulate straight into it.
    acc_ref = o_ref if acc_in_out else scratch[0]

    @pl.when(k == 0)
    def _():
        acc_ref[...] = jnp.zeros_like(acc_ref)

    w = w_ref[...]
    if exp_weights:
        # Single-batch-tile path: exp in f32 (v5e has no bf16 EUP path), then
        # cast to the MXU operand dtype.  The EUP slot overlaps under the MXU.
        w = jnp.exp(w.astype(jnp.float32)).astype(compute_dtype)

    # Contract the last dim of both operands (x: (tm,tk), w: (tn,tk)) - feeds
    # the MXU directly, no relayout of the weight tile.
    acc_ref[...] += lax.dot_general(
        x_ref[...], w,
        dimension_numbers=(((1,), (1,)), ((), ())),
        preferred_element_type=jnp.float32)

    if not acc_in_out:
        @pl.when(k == pl.num_programs(2) - 1)
        def _():
            o_ref[...] = acc_ref[...].astype(o_ref.dtype)


def positive_linear(x, log_weight, *, compute_dtype=jnp.bfloat16,
                    tm=256, tn=512, tk=512):
    """y = x @ exp(log_weight).T  -- tiled Pallas TPU kernel."""
    B, K = x.shape
    N, K_w = log_weight.shape
    assert K == K_w, "in_features mismatch"
    out_dtype = x.dtype

    # Tile sizes: second-to-last dims multiples of the sublane pack (16 for
    # bf16 operands), last dims multiples of 128 (lane-dense loads/stores).
    # Shrink tiles for small problems.
    sub = 16 if jnp.dtype(compute_dtype).itemsize == 2 else 8
    tm = min(_round_up(tm, sub), _round_up(B, sub))
    tn = min(_round_up(tn, 128), _round_up(N, 128))
    tk = min(_round_up(tk, 128), _round_up(K, 128))

    Bp, Np, Kp = _round_up(B, tm), _round_up(N, tn), _round_up(K, tk)

    # Pre-cast x to the MXU operand dtype in the wrapper (halves x HBM bytes
    # across the Np/tn re-read passes and removes the per-step VPU cast).
    x_c = x.astype(compute_dtype)
    if (Bp, Kp) != (B, K):
        x_c = jnp.pad(x_c, ((0, Bp - B), (0, Kp - K)))

    n_batch_tiles = Bp // tm
    pre_exp = n_batch_tiles > 1
    if pre_exp:
        # exp(W) hoisted to an XLA pass at HBM roofline; the kernel then
        # streams half-width bf16 weights for every batch-tile re-read.
        w_in = jnp.exp(log_weight.astype(jnp.float32)).astype(compute_dtype)
    else:
        # Single batch tile: no reuse to exploit, exp inline in the kernel.
        w_in = log_weight.astype(jnp.float32)
    if (Np, Kp) != (N, K):
        # Padded K columns of x are zero, so exp(0)=1 (inline path) or the
        # zero-padded exp weights (pre-exp path) contribute nothing.
        w_in = jnp.pad(w_in, ((0, Np - N), (0, Kp - K)))

    acc_in_out = jnp.dtype(out_dtype) == jnp.float32

    grid = (Bp // tm, Np // tn, Kp // tk)          # (i, j, k) - K innermost
    n_i, n_j, _ = grid

    kernel = functools.partial(
        _positive_linear_kernel,
        exp_weights=not pre_exp,
        acc_in_out=acc_in_out,
        compute_dtype=compute_dtype)

    scratch_shapes = [] if acc_in_out else [pltpu.VMEM((tm, tn), jnp.float32)]

    itemsize_x = jnp.dtype(x_c.dtype).itemsize
    itemsize_w = jnp.dtype(w_in.dtype).itemsize
    itemsize_o = jnp.dtype(out_dtype).itemsize

    # Double-buffered tile footprint + accumulator, with headroom.  Explicit
    # so v5e's 16 MiB scoped default never constrains the tiling; stays well
    # under v7x's 64 MiB physical VMEM.
    tile_bytes = (2 * tm * tk * itemsize_x
                  + 2 * tn * tk * itemsize_w
                  + 2 * tm * tn * itemsize_o
                  + (0 if acc_in_out else tm * tn * 4))
    vmem_limit_bytes = min(max(2 * tile_bytes, 32 * 1024 * 1024),
                           64 * 1024 * 1024)

    out = pl.pallas_call(
        kernel,
        out_shape=jax.ShapeDtypeStruct((Bp, Np), out_dtype),
        grid_spec=pltpu.PrefetchScalarGridSpec(
            num_scalar_prefetch=0,
            grid=grid,
            in_specs=[
                pl.BlockSpec((tm, tk), lambda i, j, k: (i, k)),   # x (bf16)
                pl.BlockSpec((tn, tk), lambda i, j, k: (j, k)),   # W (exp'd or log)
            ],
            out_specs=pl.BlockSpec((tm, tn), lambda i, j, k: (i, j)),
            scratch_shapes=scratch_shapes,
        ),
        compiler_params=pltpu.CompilerParams(
            # i and j are independent (megacore / v7x 2-TC shardable); k is
            # the reduction and must stay sequential.
            dimension_semantics=("parallel", "parallel", "arbitrary"),
            vmem_limit_bytes=vmem_limit_bytes,
        ),
        cost_estimate=pl.CostEstimate(
            flops=2 * B * N * K,
            transcendentals=N * K,
            # Include tile re-read factors: x is streamed once per j tile,
            # W once per i tile.
            bytes_accessed=(n_j * Bp * Kp * itemsize_x
                            + n_i * Np * Kp * itemsize_w
                            + Bp * Np * itemsize_o),
        ),
    )(x_c, w_in)

    return out[:B, :N]


def xavier_uniform(key, out_features, in_features, dtype=jnp.float32):
    # Matches torch.nn.init.xavier_uniform_ (gain=1).
    limit = math.sqrt(6.0 / (in_features + out_features))
    return jax.random.uniform(
        key, (out_features, in_features), dtype=dtype, minval=-limit, maxval=limit
    )


def _reference(x, log_weight):
    # Reference with the same bf16 operand rounding the kernel's MXU sees
    # (exp in f32 -> bf16 operands -> f32 accumulation).
    xb = x.astype(jnp.bfloat16).astype(jnp.float32)
    wb = jnp.exp(log_weight).astype(jnp.bfloat16).astype(jnp.float32)
    return lax.dot_general(xb, wb, dimension_numbers=(((1,), (1,)), ((), ())),
                           precision=lax.Precision.HIGHEST)


if __name__ == "__main__":
    key = jax.random.PRNGKey(0)
    k1, k2, k3, k4, k5, k6 = jax.random.split(key, 6)

    # 1) Tiny shape at the scale the toy PyTorch module implies.  Single
    #    tile -> inline-exp kernel path + direct f32 output accumulation,
    #    plus padding to (16,128)-aligned tiles and slice-back.
    b, kf, nf = 8, 32, 16
    x = jax.random.normal(k1, (b, kf), dtype=jnp.float32)
    lw = xavier_uniform(k2, nf, kf)
    y = jax.block_until_ready(positive_linear(x, lw))
    assert y.shape == (b, nf) and y.dtype == x.dtype
    y_ref = _reference(x, lw)
    assert jnp.allclose(y, y_ref, rtol=1e-2, atol=1e-2), \
        float(jnp.max(jnp.abs(y - y_ref)))

    # 2) Multi-tile grid (2, 2, 2) with explicit small tiles: exercises the
    #    pre-exponentiated bf16-weight path (>1 batch tile), the K-axis
    #    accumulation into the f32 output, and megacore-parallel i/j axes.
    b2, kf2, nf2 = 256, 512, 512
    x2 = jax.random.normal(k3, (b2, kf2), dtype=jnp.float32)
    lw2 = xavier_uniform(k4, nf2, kf2)
    y2 = jax.block_until_ready(positive_linear(x2, lw2, tm=128, tn=256, tk=256))
    assert y2.shape == (b2, nf2)
    y2_ref = _reference(x2, lw2)
    assert jnp.allclose(y2, y2_ref, rtol=1e-2, atol=1e-2), \
        float(jnp.max(jnp.abs(y2 - y2_ref)))

    # 3) bf16 input/output: exercises the f32 scratch-accumulator + cast
    #    epilogue path (output dtype is not f32).
    b3, kf3, nf3 = 64, 256, 128
    x3 = jax.random.normal(k5, (b3, kf3), dtype=jnp.float32).astype(jnp.bfloat16)
    lw3 = xavier_uniform(k6, nf3, kf3)
    y3 = jax.block_until_ready(positive_linear(x3, lw3))
    assert y3.shape == (b3, nf3) and y3.dtype == jnp.bfloat16
    y3_ref = _reference(x3.astype(jnp.float32), lw3)
    assert jnp.allclose(y3.astype(jnp.float32), y3_ref, rtol=5e-2, atol=5e-1), \
        float(jnp.max(jnp.abs(y3.astype(jnp.float32) - y3_ref)))

    print("KERNEL_OK")
</pallas_src>

<mosaic_0001>
module attributes {stable_mosaic.version = 11 : i64} {
  func.func @_positive_linear_kernel(%arg0: i32, %arg1: i32, %arg2: i32, %arg3: memref<16x128xbf16, #tpu.memory_space<vmem>>, %arg4: memref<128x128xf32, #tpu.memory_space<vmem>>, %arg5: memref<16x128xf32, #tpu.memory_space<vmem>>) attributes {dimension_semantics = [#tpu.dimension_semantics<parallel>, #tpu.dimension_semantics<parallel>, #tpu.dimension_semantics<arbitrary>], iteration_bounds = array<i64: 1, 1, 1>, scalar_prefetch = 0 : i64, scratch_operands = 0 : i64, tpu.core_type = #tpu.core_type<tc>, window_params = [{transform_indices = @transform_0, window_bounds = array<i64: 16, 128>}, {transform_indices = @transform_1, window_bounds = array<i64: 128, 128>}, {transform_indices = @transform_2, window_bounds = array<i64: 16, 128>}]} {
    %c0_i32 = arith.constant 0 : i32
    %0 = arith.cmpi eq, %arg2, %c0_i32 : i32
    %1 = arith.extui %0 : i1 to i32
    %c0_i32_0 = arith.constant 0 : i32
    %2 = arith.cmpi ne, %1, %c0_i32_0 : i32
    scf.if %2 {
      %cst_8 = arith.constant 0.000000e+00 : f32
      %11 = vector.broadcast %cst_8 : f32 to vector<16x128xf32>
      %c0_9 = arith.constant 0 : index
      %c0_10 = arith.constant 0 : index
      %12 = vector.load %arg5[%c0_9, %c0_10] : memref<16x128xf32, #tpu.memory_space<vmem>>, vector<16x128xf32>
      tpu.vector_store %arg5[%c0_9, %c0_10], %11 {strides = array<i32>} : memref<16x128xf32, #tpu.memory_space<vmem>>, vector<16x128xf32>,
    } else {
    }
    %c0 = arith.constant 0 : index
    %c0_1 = arith.constant 0 : index
    %3 = vector.load %arg4[%c0, %c0_1] : memref<128x128xf32, #tpu.memory_space<vmem>>, vector<128x128xf32>
    %4 = math.exp %3 : vector<128x128xf32>
    %5 = arith.truncf %4 : vector<128x128xf32> to vector<128x128xbf16>
    %c0_2 = arith.constant 0 : index
    %c0_3 = arith.constant 0 : index
    %6 = vector.load %arg5[%c0_2, %c0_3] : memref<16x128xf32, #tpu.memory_space<vmem>>, vector<16x128xf32>
    %c0_4 = arith.constant 0 : index
    %c0_5 = arith.constant 0 : index
    %7 = vector.load %arg3[%c0_4, %c0_5] : memref<16x128xbf16, #tpu.memory_space<vmem>>, vector<16x128xbf16>
    %cst = arith.constant dense<0.000000e+00> : vector<16x128xf32>
    %8 = tpu.matmul %7, %5, %cst {dimension_numbers = #tpu.dot_dimension_numbers<[1], [1], [0], [0], [0, 0, 1, 0], [], []>} : vector<16x128xbf16>, vector<128x128xbf16>, vector<16x128xf32> -> vector<16x128xf32>
    %9 = arith.addf %6, %8 : vector<16x128xf32>
    %c0_6 = arith.constant 0 : index
    %c0_7 = arith.constant 0 : index
    %10 = vector.load %arg5[%c0_6, %c0_7] : memref<16x128xf32, #tpu.memory_space<vmem>>, vector<16x128xf32>
    tpu.vector_store %arg5[%c0_6, %c0_7], %9 {strides = array<i32>} : memref<16x128xf32, #tpu.memory_space<vmem>>, vector<16x128xf32>,
    return
  }
  func.func @transform_0(%arg0: i32, %arg1: i32, %arg2: i32) -> (i32, i32) {
    %c0_i32 = arith.constant 0 : i32
    return %arg0, %arg2 : i32, i32
  }
  func.func @transform_1(%arg0: i32, %arg1: i32, %arg2: i32) -> (i32, i32) {
    %c0_i32 = arith.constant 0 : i32
    return %arg1, %arg2 : i32, i32
  }
  func.func @transform_2(%arg0: i32, %arg1: i32, %arg2: i32) -> (i32, i32) {
    %c0_i32 = arith.constant 0 : i32
    return %arg0, %arg1 : i32, i32
  }
}

</mosaic_0001>

<llo_original>
// kernel: tpu_custom_call.1
$region0: #{tpu_custom_call.1}
  #allocation0 [shape = 'u32[]', space=smem, size = 0x4, offset = 0x4, fixed_abs, tag = 'smem constant byte address 0x4 - core index']
  #allocation1 [shape = 'u32[72,128]{1,0:T(1,128)}', space=vmem, size = 0x9000, scoped, tag = 'internal scratch']
  %s0 = inlined_call_operand.hbm [shape: bf16[16,128], index: 0, kind: input, shape index: {}]
  %s1 = inlined_call_operand.hbm [shape: f32[128,128], index: 1, kind: input, shape index: {}]
  %s2 = inlined_call_operand.hbm [shape: f32[16,128], index: 2, kind: output, shape index: {}]
  %s3 = sld [smem:[#allocation0]]
  $region30: #{tpu_custom_call.1} parent=0
    _
  %s5 = ssub.s32 1, %s3
  %s6 = scalar_select 0, %s5, %s3
  $region1: #{tpu_custom_call.1} parent=0
    #allocation2 [shape = 'u8[4096]{0}', space=vmem, size = 0x1000, scoped, tag = 'input window, operand 0, single buffered']
    #allocation3 [shape = 's32[1]{0}', space=sflag, size = 0x4, scoped, tag = 'scoped memory for tpu_custom_call.1']
    #allocation4 [shape = 's32[1]{0}', space=sflag, size = 0x4, scoped, tag = 'scoped memory for tpu_custom_call.1']
    #allocation5 [shape = 'u8[65536]{0}', space=vmem, size = 0x10000, scoped, tag = 'input window, operand 1, single buffered']
    #allocation6 [shape = 's32[1]{0}', space=sflag, size = 0x4, scoped, tag = 'scoped memory for tpu_custom_call.1']
    #allocation7 [shape = 'u8[8192]{0}', space=vmem, size = 0x2000, scoped, tag = 'output window, operand 0, single buffered']
    %7 = vsyncpa [#allocation3], 0
    %8 = vsyncpa [#allocation6], 0
    %9 = vsyncpa [#allocation4], 0
    // Predicated region
    $region2: #{tpu_custom_call.1} parent=1 // pred_check
      _
    $region3: #{tpu_custom_call.1} parent=1 // pred_check_branch
      %11 = sbr.rel (0) target = $region5
    $region4: #{tpu_custom_call.1} parent=1 // pred_region
      %13 = vsyncadd [#allocation3], 0
      %s14 = sshll.u32 %s0, 4
      %s15 = int_to_ptr.hbm [resolvable:$true] %s14
      %s16 = sshll.u32 [#allocation2], 4
      %s17 = int_to_ptr.vmem [resolvable:$true] %s16
      %22 = dma.hbm_to_vmem [thread:$0]  %s15, 128, %s17, [#allocation3], 64, 64, 4
    $region5: #{tpu_custom_call.1} parent=1 // pred_fallthru
      _
    // Predicated region
    $region6: #{tpu_custom_call.1} parent=1 // pred_check
      _
    $region7: #{tpu_custom_call.1} parent=1 // pred_check_branch
      %24 = sbr.rel (0) target = $region9
    $region8: #{tpu_custom_call.1} parent=1 // pred_region
      %26 = vsyncadd [#allocation6], 0
      %s27 = sshll.u32 %s1, 4
      %s28 = int_to_ptr.hbm [resolvable:$true] %s27
      %s29 = sshll.u32 [#allocation5], 4
      %s30 = int_to_ptr.vmem [resolvable:$true] %s29
      %35 = dma.hbm_to_vmem [thread:$0]  %s28, 2048, %s30, [#allocation6], 128, 128, 8
    $region9: #{tpu_custom_call.1} parent=1 // pred_fallthru
      _
    // Predicated region
    $region10: #{tpu_custom_call.1} parent=1 // pred_check
      _
    $region11: #{tpu_custom_call.1} parent=1 // pred_check_branch
      %37 = sbr.rel (0) target = $region13
    $region12: #{tpu_custom_call.1} parent=1 // pred_region
      %39 = dma.done [#allocation3], 128
    $region13: #{tpu_custom_call.1} parent=1 // pred_fallthru
      _
    // Predicated region
    $region14: #{tpu_custom_call.1} parent=1 // pred_check
      _
    $region15: #{tpu_custom_call.1} parent=1 // pred_check_branch
      %41 = sbr.rel (0) target = $region17
    $region16: #{tpu_custom_call.1} parent=1 // pred_region
      %43 = dma.done [#allocation6], 2048
    $region17: #{tpu_custom_call.1} parent=1 // pred_fallthru
      _
    %p44 = scmp.eq.s32.totalorder 0, 0
    // Predicated region
    $region18: #{tpu_custom_call.1} parent=1 // pred_check
      %p45 = pneg %p44
    $region19: #{tpu_custom_call.1} parent=1 // pred_check_branch
      %47 = sbr.rel (%p45) target = $region21
    $region20: #{tpu_custom_call.1} parent=1 // pred_region
      %48 = vst [vmem:[#allocation7] sm:$0xff] 0.0
      %49 = vst [vmem:[#allocation7 + $0x8] sm:$0xff] 0.0
    $region21: #{tpu_custom_call.1} parent=1 // pred_fallthru
      _
    %v50 = vld [vmem:[#allocation5] sm:$0xff]
    %v51 = vld [vmem:[#allocation5 + $0x8] sm:$0xff]
    %v52 = vld [vmem:[#allocation5 + $0x10] sm:$0xff]
    %v53 = vld [vmem:[#allocation5 + $0x18] sm:$0xff]
    %v54 = vld [vmem:[#allocation5 + $0x20] sm:$0xff]
    %v55 = vld [vmem:[#allocation5 + $0x28] sm:$0xff]
    %v56 = vld [vmem:[#allocation5 + $0x30] sm:$0xff]
    %v57 = vld [vmem:[#allocation5 + $0x38] sm:$0xff]
    %v58 = vld [vmem:[#allocation5 + $0x40] sm:$0xff]
    %v59 = vld [vmem:[#allocation5 + $0x48] sm:$0xff]
    %v60 = vld [vmem:[#allocation5 + $0x50] sm:$0xff]
    %v61 = vld [vmem:[#allocation5 + $0x58] sm:$0xff]
    %v62 = vld [vmem:[#allocation5 + $0x60] sm:$0xff]
    %v63 = vld [vmem:[#allocation5 + $0x68] sm:$0xff]
    %v64 = vld [vmem:[#allocation5 + $0x70] sm:$0xff]
    %v65 = vld [vmem:[#allocation5 + $0x78] sm:$0xff]
    %v66 = vmul.f32 %v50, 1.442695
    %v67 = vpow.pop %v66
    %v68 = vmul.f32 %v51, 1.442695
    %v69 = vpow.pop %v68
    %v70 = vmul.f32 %v52, 1.442695
    %v71 = vpow.pop %v70
    %v72 = vmul.f32 %v53, 1.442695
    %v73 = vpow.pop %v72
    %v74 = vmul.f32 %v54, 1.442695
    %v75 = vpow.pop %v74
    %v76 = vmul.f32 %v55, 1.442695
    %v77 = vpow.pop %v76
    %v78 = vmul.f32 %v56, 1.442695
    %v79 = vpow.pop %v78
    %v80 = vmul.f32 %v57, 1.442695
    %v81 = vpow.pop %v80
    %v82 = vmul.f32 %v58, 1.442695
    %v83 = vpow.pop %v82
    %v84 = vmul.f32 %v59, 1.442695
    %v85 = vpow.pop %v84
    %v86 = vmul.f32 %v60, 1.442695
    %v87 = vpow.pop %v86
    %v88 = vmul.f32 %v61, 1.442695
    %v89 = vpow.pop %v88
    %v90 = vmul.f32 %v62, 1.442695
    %v91 = vpow.pop %v90
    %v92 = vmul.f32 %v63, 1.442695
    %v93 = vpow.pop %v92
    %v94 = vmul.f32 %v64, 1.442695
    %v95 = vpow.pop %v94
    %v96 = vmul.f32 %v65, 1.442695
    %v97 = vpow.pop %v96
    %v98 = vpack.c.bf16 %v69, %v67
    %v99 = vpack.c.bf16 %v73, %v71
    %v100 = vpack.c.bf16 %v77, %v75
    %v101 = vpack.c.bf16 %v81, %v79
    %v102 = vpack.c.bf16 %v85, %v83
    %v103 = vpack.c.bf16 %v89, %v87
    %v104 = vpack.c.bf16 %v93, %v91
    %v105 = vpack.c.bf16 %v97, %v95
    %v106 = vld [vmem:[#allocation7] sm:$0xff]
    %v107 = vld [vmem:[#allocation7 + $0x8] sm:$0xff]
    %v108 = vld [vmem:[#allocation2] sm:$0xf]
    %v109 = vld [vmem:[#allocation2 + $0x4] sm:$0xf]
    %v112 = vunpack.c.l.b16 %v108
    %v113 = vunpack.c.l.b16 %v109
    %v114 = vpack.c.b16 %v113, %v112
    %116 = vmatpush.bf16.xpose.msra.mxu0 %v105
    %117 = vmatpush.bf16.xpose.msra.mxu0 %v104
    %118 = vmatpush.bf16.xpose.msra.mxu0 %v103
    %119 = vmatpush.bf16.xpose.msra.mxu0 %v102
    %120 = vmatpush.bf16.xpose.msra.mxu0 %v101
    %121 = vmatpush.bf16.xpose.msra.mxu0 %v100
    %122 = vmatpush.bf16.xpose.msra.mxu0 %v99
    %123 = vmatpush.bf16.xpose.msra.mxu0 %v98
    %124 = vmatmul.bf16.gmra.mxu0 %v114
    %v125 = vpop.f32.mrf.mxu0
    %v126 = vadd.f32 0.0, %v125
    %v127 = vpop.f32.mrf.mxu0
    %v128 = vadd.f32 0.0, %v127
    %129 = vdwg.mxu0
    %v130 = vadd.f32 %v106, %v126
    %v131 = vadd.f32 %v107, %v128
    %132 = vst [vmem:[#allocation7] sm:$0xff] %v130
    %133 = vst [vmem:[#allocation7 + $0x8] sm:$0xff] %v131
    // Predicated region
    $region22: #{tpu_custom_call.1} parent=1 // pred_check
      _
    $region23: #{tpu_custom_call.1} parent=1 // pred_check_branch
      %135 = sbr.rel (0) target = $region25
    $region24: #{tpu_custom_call.1} parent=1 // pred_region
      %137 = vsyncadd [#allocation4], 0
      %s138 = sshll.u32 [#allocation7], 4
      %s139 = int_to_ptr.vmem [resolvable:$true] %s138
      %s140 = sshll.u32 %s2, 4
      %s141 = int_to_ptr.hbm [resolvable:$true] %s140
      %146 = dma.vmem_to_hbm [thread:$0]  %s139, 256, %s141, [#allocation4], 128, 128, 8
    $region25: #{tpu_custom_call.1} parent=1 // pred_fallthru
      _
    // Predicated region
    $region26: #{tpu_custom_call.1} parent=1 // pred_check
      _
    $region27: #{tpu_custom_call.1} parent=1 // pred_check_branch
      %148 = sbr.rel (0) target = $region29
    $region28: #{tpu_custom_call.1} parent=1 // pred_region
      %150 = dma.done [#allocation4], 256
    $region29: #{tpu_custom_call.1} parent=1 // pred_fallthru
      _
    %151 = vsyncpa [#allocation3], 1
    %152 = vsyncpa [#allocation6], 1
    %153 = vsyncpa [#allocation4], 1

</llo_original>
